<compile_context>
chip_gen: v5e
topology: v5e:2x2
jax: 0.10.0
libtpu: 0.0.40
codegen_flags: <defaults>
</compile_context>

<pallas_src>
import functools
import math

import jax
import jax.numpy as jnp
from jax.experimental import pallas as pl
from jax.experimental.pallas import tpu as pltpu

LOG_2PI = math.log(2.0 * math.pi)

_TF_CAP = 512 * 64   # feature-tile cap: keeps the unrolled fold loop short


def _sq_err_kernel(x_ref, xr_ref, acc_ref, *, fold, n_fold, feat_dim,
                   last_tile_start, needs_feat_mask, split_features):
    """Accumulate (x - x_rec)^2, folded to a resident (tb, fold) f32 block.

    Grid = (parallel, reduction).  The output block is resident across the
    reduction axis: zeroed on the first reduction step of each parallel
    block, lane-dense partial sums at the end.
    """
    kf = pl.program_id(1)

    @pl.when(kf == 0)
    def _init():
        acc_ref[...] = jnp.zeros_like(acc_ref)

    def _accumulate(masked):
        # Unrolled, 128-lane-aligned chunk loop: pure VPU diff/square/add.
        for j in range(n_fold):
            sl = pl.ds(j * fold, fold)                     # static slice
            d = (x_ref[:, sl].astype(jnp.float32)
                 - xr_ref[:, sl].astype(jnp.float32))
            d2 = d * d
            if masked:
                col = (last_tile_start + j * fold
                       + jax.lax.broadcasted_iota(jnp.int32, d2.shape, 1))
                d2 = jnp.where(col < feat_dim, d2, 0.0)
            acc_ref[...] += d2

    if not needs_feat_mask:
        _accumulate(False)
    else:
        last_red = pl.num_programs(1) - 1
        if split_features:
            is_last = jnp.logical_and(
                pl.program_id(0) == pl.num_programs(0) - 1, kf == last_red)
        else:
            is_last = kf == last_red

        @pl.when(jnp.logical_not(is_last))
        def _hot():                      # hot path: no mask
            _accumulate(False)

        @pl.when(is_last)
        def _ragged_tail():              # mask only the final feature tile
            _accumulate(True)


def _device_budget():
    """(per-input-tile byte budget, vmem_limit_bytes or None) by generation."""
    kind = ""
    try:
        kind = jax.devices()[0].device_kind.lower()
    except Exception:
        pass
    if "v5 lite" in kind or "v5e" in kind or "v5lite" in kind:
        return (3 << 20) // 2, None          # 16 MiB default scoped VMEM
    if "v6" in kind or "trillium" in kind:
        return 4 << 20, 64 << 20             # 128 MiB physical VMEM
    if "v7" in kind or "7x" in kind:
        return 6 << 20, 48 << 20             # only 64 MiB physical VMEM
    return 2 << 20, None                     # conservative default


def _pick_tiles(batch, feat, itemsize, budget_bytes):
    """(tb, tf): tb multiple of sublane packing (or full small batch),
    tf multiple of 512 (or the full feature dim) sized to the byte budget."""
    sub = max(8, 32 // max(itemsize, 1))     # f32 -> 8, bf16 -> 16, int8 -> 32
    if feat <= 512:
        tf = feat                            # full dim (always legal)
    else:
        tf = min(pl.cdiv(feat, 512) * 512, _TF_CAP)
    tb = budget_bytes // max(tf * itemsize, 1)
    if batch < sub:
        tb = batch                           # full (small) batch dim
    else:
        tb = max(sub, (tb // sub) * sub)
        tb = min(tb, pl.cdiv(batch, sub) * sub)
    return tb, tf


def _pick_fold(tf, feat, itemsize):
    """Accumulator lane width: >=128 lanes, divides tf, narrow enough that
    the partials writeback + re-read is a small fraction of input traffic."""
    if tf < 128:
        return tf
    fold = 512
    while fold > 128 and 32 * fold > feat * itemsize:
        fold //= 2
    while fold >= 128:
        if tf % fold == 0:
            return fold
        fold //= 2
    return tf        # tf == feat and not 128-aligned: single full-width chunk


def kl_loss(z, x, x_rec, cov_u, cov_d, *, z_dim=12, model_precision=10.0):
    """Pallas implementation of klLoss.forward.

    z:      (B, z_dim)   latent samples
    x:      (B, C, H, W) input (NCHW)
    x_rec:  (B, C, H, W) reconstruction (NCHW)
    cov_u:  (B, z_dim)   rank-1 covariance factor of latent_dist
    cov_d:  (B, z_dim)   covariance diagonal of latent_dist (positive)
    """
    B = int(x.shape[0])
    feat_dim = 1
    for s in x.shape[1:]:
        feat_dim *= int(s)

    # Flatten only: for contiguous NCHW inputs this is a free bitcast (no
    # HBM copy); dtype is preserved so bf16 streams as bf16.
    x2 = x.reshape(B, feat_dim)
    xr2 = x_rec.reshape(B, feat_dim)
    itemsize = jnp.dtype(x2.dtype).itemsize

    budget, vmem_limit = _device_budget()
    tb, tf = _pick_tiles(B, feat_dim, itemsize, budget)
    fold = _pick_fold(tf, feat_dim, itemsize)
    n_fold = tf // fold
    num_b = pl.cdiv(B, tb)
    num_f = pl.cdiv(feat_dim, tf)
    needs_feat_mask = (feat_dim % tf) != 0

    # Guarantee >=2 blocks on the "parallel" axis (both v7x TensorCores) even
    # when the whole batch fits in one tile: split the feature reduction in
    # half, each half owning its own output rows.
    split_features = (num_b == 1) and (num_f >= 2) and (num_f % 2 == 0)
    if split_features:
        num_par, num_red = 2, num_f // 2
        f_per_par = num_red
        in_idx = lambda p, kf: (0, p * f_per_par + kf)
    else:
        num_par, num_red = num_b, num_f
        in_idx = lambda i, kf: (i, kf)

    kernel = functools.partial(
        _sq_err_kernel, fold=fold, n_fold=n_fold, feat_dim=feat_dim,
        last_tile_start=(num_f - 1) * tf,
        needs_feat_mask=needs_feat_mask, split_features=split_features)

    cost = pl.CostEstimate(
        flops=int(3 * B * feat_dim), transcendentals=0,
        bytes_accessed=int(2 * B * feat_dim * itemsize
                           + num_par * tb * fold * 4))

    cp_kwargs = dict(dimension_semantics=("parallel", "arbitrary"))
    if vmem_limit is not None:
        cp_kwargs["vmem_limit_bytes"] = int(vmem_limit)

    partials = pl.pallas_call(
        kernel,
        out_shape=jax.ShapeDtypeStruct((num_par, tb, fold), jnp.float32),
        grid_spec=pltpu.PrefetchScalarGridSpec(
            num_scalar_prefetch=0,
            grid=(num_par, num_red),
            in_specs=[pl.BlockSpec((tb, tf), in_idx),
                      pl.BlockSpec((tb, tf), in_idx)],
            out_specs=pl.BlockSpec((None, tb, fold), lambda p, kf: (p, 0, 0)),
        ),
        compiler_params=pltpu.CompilerParams(**cp_kwargs),
        cost_estimate=cost,
    )(x2, xr2)

    # Drop padded batch rows of a ragged batch tile (select-mask, so NaN/Inf
    # garbage in the padding cannot leak into the sum).
    if split_features:
        if tb != B:
            r_id = jnp.arange(tb, dtype=jnp.int32).reshape(1, tb, 1)
            partials = jnp.where(r_id < B, partials, 0.0)
    else:
        if num_par * tb != B:
            row_id = jnp.arange(num_par * tb, dtype=jnp.int32).reshape(
                num_par, tb, 1)
            partials = jnp.where(row_id < B, partials, 0.0)
    sum_l2 = jnp.sum(partials)

    # ---- O(B * z_dim) latent terms: plain JAX (not worth a kernel). --------
    zf = z.astype(jnp.float32)
    sum_z2 = jnp.sum(zf * zf)

    # Entropy of rank-1 LowRankMultivariateNormal: cov = diag(d) + u u^T
    #   H = 0.5*z_dim*(1 + log 2pi) + 0.5*[sum(log d) + log(1 + sum(u^2/d))]
    d = cov_d.astype(jnp.float32)
    u = cov_u.astype(jnp.float32)
    log_det = jnp.sum(jnp.log(d), axis=1) + jnp.log1p(jnp.sum(u * u / d, axis=1))
    ent = 0.5 * z_dim * (1.0 + LOG_2PI) + 0.5 * log_det
    sum_ent = jnp.sum(ent)

    pxz_const = -0.5 * feat_dim * math.log(2.0 * math.pi / model_precision)

    elbo = -0.5 * (sum_z2 + z_dim * LOG_2PI)
    elbo = elbo + (pxz_const - 0.5 * model_precision * sum_l2)
    elbo = elbo + sum_ent
    return -elbo


def _kl_loss_ref(z, x, x_rec, cov_u, cov_d, *, z_dim=12, model_precision=10.0):
    """Pure-JAX reference mirroring the PyTorch forward (sanity check)."""
    B = x.shape[0]
    feat_dim = 1
    for s in x.shape[1:]:
        feat_dim *= int(s)
    elbo = -0.5 * (jnp.sum(z ** 2) + z_dim * jnp.log(2 * jnp.pi))
    pxz = -0.5 * feat_dim * jnp.log(2 * jnp.pi / model_precision)
    l2s = jnp.sum((x.reshape(B, -1) - x_rec.reshape(B, -1)) ** 2, axis=1)
    pxz = pxz - 0.5 * model_precision * jnp.sum(l2s)
    elbo = elbo + pxz
    log_det = jnp.sum(jnp.log(cov_d), axis=1) + jnp.log(
        1.0 + jnp.sum(cov_u ** 2 / cov_d, axis=1))
    ent = 0.5 * z_dim * (1.0 + jnp.log(2 * jnp.pi)) + 0.5 * log_det
    elbo = elbo + jnp.sum(ent)
    return -elbo


if __name__ == "__main__":
    B, C, H, W = 2, 4, 16, 16
    Z_DIM = 12
    MODEL_PRECISION = 10.0

    key = jax.random.PRNGKey(0)
    k_z, k_x, k_xr, k_u, k_d = jax.random.split(key, 5)

    z = jax.random.normal(k_z, (B, Z_DIM), dtype=jnp.float32)
    x = jax.random.normal(k_x, (B, C, H, W), dtype=jnp.float32)
    x_rec = jax.random.normal(k_xr, (B, C, H, W), dtype=jnp.float32)
    cov_u = 0.1 * jax.random.normal(k_u, (B, Z_DIM), dtype=jnp.float32)
    cov_d = jnp.abs(jax.random.normal(k_d, (B, Z_DIM), dtype=jnp.float32)) + 0.1

    loss_fn = jax.jit(functools.partial(
        kl_loss, z_dim=Z_DIM, model_precision=MODEL_PRECISION))
    loss = jax.block_until_ready(loss_fn(z, x, x_rec, cov_u, cov_d))

    ref = _kl_loss_ref(z, x, x_rec, cov_u, cov_d,
                       z_dim=Z_DIM, model_precision=MODEL_PRECISION)
    assert jnp.allclose(loss, ref, rtol=1e-3, atol=1e-2), (loss, ref)

    print("KERNEL_OK")
</pallas_src>

<mosaic_0001>
module attributes {stable_mosaic.version = 11 : i64} {
  func.func @_sq_err_kernel(%arg0: i32, %arg1: i32, %arg2: memref<2x1024xf32, #tpu.memory_space<vmem>>, %arg3: memref<2x1024xf32, #tpu.memory_space<vmem>>, %arg4: memref<1x2x128xf32, #tpu.memory_space<vmem>>) attributes {dimension_semantics = [#tpu.dimension_semantics<parallel>, #tpu.dimension_semantics<arbitrary>], iteration_bounds = array<i64: 1, 1>, scalar_prefetch = 0 : i64, scratch_operands = 0 : i64, tpu.core_type = #tpu.core_type<tc>, window_params = [{transform_indices = @transform_0, window_bounds = array<i64: 2, 1024>}, {transform_indices = @transform_1, window_bounds = array<i64: 2, 1024>}, {transform_indices = @transform_2, window_bounds = array<i64: 1, 2, 128>}]} {
    %c0_i32 = arith.constant 0 : i32
    %0 = arith.cmpi eq, %arg1, %c0_i32 : i32
    %1 = arith.extui %0 : i1 to i32
    %c0_i32_0 = arith.constant 0 : i32
    %2 = arith.cmpi ne, %1, %c0_i32_0 : i32
    scf.if %2 {
      %cst = arith.constant 0.000000e+00 : f32
      %83 = vector.broadcast %cst : f32 to vector<2x128xf32>
      %c0_73 = arith.constant 0 : index
      %c0_74 = arith.constant 0 : index
      %c0_75 = arith.constant 0 : index
      %84 = vector.load %arg4[%c0_73, %c0_74, %c0_75] : memref<1x2x128xf32, #tpu.memory_space<vmem>>, vector<1x2x128xf32>
      %85 = vector.shape_cast %84 : vector<1x2x128xf32> to vector<2x128xf32>
      %86 = vector.shape_cast %83 : vector<2x128xf32> to vector<1x2x128xf32>
      tpu.vector_store %arg4[%c0_73, %c0_74, %c0_75], %86 {strides = array<i32>} : memref<1x2x128xf32, #tpu.memory_space<vmem>>, vector<1x2x128xf32>,
    } else {
    }
    %c0 = arith.constant 0 : index
    %c0_1 = arith.constant 0 : index
    %3 = vector.load %arg2[%c0, %c0_1] : memref<2x1024xf32, #tpu.memory_space<vmem>>, vector<2x128xf32>
    %c0_2 = arith.constant 0 : index
    %c0_3 = arith.constant 0 : index
    %4 = vector.load %arg3[%c0_2, %c0_3] : memref<2x1024xf32, #tpu.memory_space<vmem>>, vector<2x128xf32>
    %5 = arith.subf %3, %4 : vector<2x128xf32>
    %6 = arith.mulf %5, %5 : vector<2x128xf32>
    %c0_4 = arith.constant 0 : index
    %c0_5 = arith.constant 0 : index
    %c0_6 = arith.constant 0 : index
    %7 = vector.load %arg4[%c0_4, %c0_5, %c0_6] : memref<1x2x128xf32, #tpu.memory_space<vmem>>, vector<1x2x128xf32>
    %8 = vector.shape_cast %7 : vector<1x2x128xf32> to vector<2x128xf32>
    %9 = arith.addf %8, %6 : vector<2x128xf32>
    %c0_7 = arith.constant 0 : index
    %c0_8 = arith.constant 0 : index
    %c0_9 = arith.constant 0 : index
    %10 = vector.load %arg4[%c0_7, %c0_8, %c0_9] : memref<1x2x128xf32, #tpu.memory_space<vmem>>, vector<1x2x128xf32>
    %11 = vector.shape_cast %10 : vector<1x2x128xf32> to vector<2x128xf32>
    %12 = vector.shape_cast %9 : vector<2x128xf32> to vector<1x2x128xf32>
    tpu.vector_store %arg4[%c0_7, %c0_8, %c0_9], %12 {strides = array<i32>} : memref<1x2x128xf32, #tpu.memory_space<vmem>>, vector<1x2x128xf32>,
    %c0_10 = arith.constant 0 : index
    %c128 = arith.constant 128 : index
    %13 = vector.load %arg2[%c0_10, %c128] : memref<2x1024xf32, #tpu.memory_space<vmem>>, vector<2x128xf32>
    %c0_11 = arith.constant 0 : index
    %c128_12 = arith.constant 128 : index
    %14 = vector.load %arg3[%c0_11, %c128_12] : memref<2x1024xf32, #tpu.memory_space<vmem>>, vector<2x128xf32>
    %15 = arith.subf %13, %14 : vector<2x128xf32>
    %16 = arith.mulf %15, %15 : vector<2x128xf32>
    %c0_13 = arith.constant 0 : index
    %c0_14 = arith.constant 0 : index
    %c0_15 = arith.constant 0 : index
    %17 = vector.load %arg4[%c0_13, %c0_14, %c0_15] : memref<1x2x128xf32, #tpu.memory_space<vmem>>, vector<1x2x128xf32>
    %18 = vector.shape_cast %17 : vector<1x2x128xf32> to vector<2x128xf32>
    %19 = arith.addf %18, %16 : vector<2x128xf32>
    %c0_16 = arith.constant 0 : index
    %c0_17 = arith.constant 0 : index
    %c0_18 = arith.constant 0 : index
    %20 = vector.load %arg4[%c0_16, %c0_17, %c0_18] : memref<1x2x128xf32, #tpu.memory_space<vmem>>, vector<1x2x128xf32>
    %21 = vector.shape_cast %20 : vector<1x2x128xf32> to vector<2x128xf32>
    %22 = vector.shape_cast %19 : vector<2x128xf32> to vector<1x2x128xf32>
    tpu.vector_store %arg4[%c0_16, %c0_17, %c0_18], %22 {strides = array<i32>} : memref<1x2x128xf32, #tpu.memory_space<vmem>>, vector<1x2x128xf32>,
    %c0_19 = arith.constant 0 : index
    %c256 = arith.constant 256 : index
    %23 = vector.load %arg2[%c0_19, %c256] : memref<2x1024xf32, #tpu.memory_space<vmem>>, vector<2x128xf32>
    %c0_20 = arith.constant 0 : index
    %c256_21 = arith.constant 256 : index
    %24 = vector.load %arg3[%c0_20, %c256_21] : memref<2x1024xf32, #tpu.memory_space<vmem>>, vector<2x128xf32>
    %25 = arith.subf %23, %24 : vector<2x128xf32>
    %26 = arith.mulf %25, %25 : vector<2x128xf32>
    %c0_22 = arith.constant 0 : index
    %c0_23 = arith.constant 0 : index
    %c0_24 = arith.constant 0 : index
    %27 = vector.load %arg4[%c0_22, %c0_23, %c0_24] : memref<1x2x128xf32, #tpu.memory_space<vmem>>, vector<1x2x128xf32>
    %28 = vector.shape_cast %27 : vector<1x2x128xf32> to vector<2x128xf32>
    %29 = arith.addf %28, %26 : vector<2x128xf32>
    %c0_25 = arith.constant 0 : index
    %c0_26 = arith.constant 0 : index
    %c0_27 = arith.constant 0 : index
    %30 = vector.load %arg4[%c0_25, %c0_26, %c0_27] : memref<1x2x128xf32, #tpu.memory_space<vmem>>, vector<1x2x128xf32>
    %31 = vector.shape_cast %30 : vector<1x2x128xf32> to vector<2x128xf32>
    %32 = vector.shape_cast %29 : vector<2x128xf32> to vector<1x2x128xf32>
    tpu.vector_store %arg4[%c0_25, %c0_26, %c0_27], %32 {strides = array<i32>} : memref<1x2x128xf32, #tpu.memory_space<vmem>>, vector<1x2x128xf32>,
    %c0_28 = arith.constant 0 : index
    %c384 = arith.constant 384 : index
    %33 = vector.load %arg2[%c0_28, %c384] : memref<2x1024xf32, #tpu.memory_space<vmem>>, vector<2x128xf32>
    %c0_29 = arith.constant 0 : index
    %c384_30 = arith.constant 384 : index
    %34 = vector.load %arg3[%c0_29, %c384_30] : memref<2x1024xf32, #tpu.memory_space<vmem>>, vector<2x128xf32>
    %35 = arith.subf %33, %34 : vector<2x128xf32>
    %36 = arith.mulf %35, %35 : vector<2x128xf32>
    %c0_31 = arith.constant 0 : index
    %c0_32 = arith.constant 0 : index
    %c0_33 = arith.constant 0 : index
    %37 = vector.load %arg4[%c0_31, %c0_32, %c0_33] : memref<1x2x128xf32, #tpu.memory_space<vmem>>, vector<1x2x128xf32>
    %38 = vector.shape_cast %37 : vector<1x2x128xf32> to vector<2x128xf32>
    %39 = arith.addf %38, %36 : vector<2x128xf32>
    %c0_34 = arith.constant 0 : index
    %c0_35 = arith.constant 0 : index
    %c0_36 = arith.constant 0 : index
    %40 = vector.load %arg4[%c0_34, %c0_35, %c0_36] : memref<1x2x128xf32, #tpu.memory_space<vmem>>, vector<1x2x128xf32>
    %41 = vector.shape_cast %40 : vector<1x2x128xf32> to vector<2x128xf32>
    %42 = vector.shape_cast %39 : vector<2x128xf32> to vector<1x2x128xf32>
    tpu.vector_store %arg4[%c0_34, %c0_35, %c0_36], %42 {strides = array<i32>} : memref<1x2x128xf32, #tpu.memory_space<vmem>>, vector<1x2x128xf32>,
    %c0_37 = arith.constant 0 : index
    %c512 = arith.constant 512 : index
    %43 = vector.load %arg2[%c0_37, %c512] : memref<2x1024xf32, #tpu.memory_space<vmem>>, vector<2x128xf32>
    %c0_38 = arith.constant 0 : index
    %c512_39 = arith.constant 512 : index
    %44 = vector.load %arg3[%c0_38, %c512_39] : memref<2x1024xf32, #tpu.memory_space<vmem>>, vector<2x128xf32>
    %45 = arith.subf %43, %44 : vector<2x128xf32>
    %46 = arith.mulf %45, %45 : vector<2x128xf32>
    %c0_40 = arith.constant 0 : index
    %c0_41 = arith.constant 0 : index
    %c0_42 = arith.constant 0 : index
    %47 = vector.load %arg4[%c0_40, %c0_41, %c0_42] : memref<1x2x128xf32, #tpu.memory_space<vmem>>, vector<1x2x128xf32>
    %48 = vector.shape_cast %47 : vector<1x2x128xf32> to vector<2x128xf32>
    %49 = arith.addf %48, %46 : vector<2x128xf32>
    %c0_43 = arith.constant 0 : index
    %c0_44 = arith.constant 0 : index
    %c0_45 = arith.constant 0 : index
    %50 = vector.load %arg4[%c0_43, %c0_44, %c0_45] : memref<1x2x128xf32, #tpu.memory_space<vmem>>, vector<1x2x128xf32>
    %51 = vector.shape_cast %50 : vector<1x2x128xf32> to vector<2x128xf32>
    %52 = vector.shape_cast %49 : vector<2x128xf32> to vector<1x2x128xf32>
    tpu.vector_store %arg4[%c0_43, %c0_44, %c0_45], %52 {strides = array<i32>} : memref<1x2x128xf32, #tpu.memory_space<vmem>>, vector<1x2x128xf32>,
    %c0_46 = arith.constant 0 : index
    %c640 = arith.constant 640 : index
    %53 = vector.load %arg2[%c0_46, %c640] : memref<2x1024xf32, #tpu.memory_space<vmem>>, vector<2x128xf32>
    %c0_47 = arith.constant 0 : index
    %c640_48 = arith.constant 640 : index
    %54 = vector.load %arg3[%c0_47, %c640_48] : memref<2x1024xf32, #tpu.memory_space<vmem>>, vector<2x128xf32>
    %55 = arith.subf %53, %54 : vector<2x128xf32>
    %56 = arith.mulf %55, %55 : vector<2x128xf32>
    %c0_49 = arith.constant 0 : index
    %c0_50 = arith.constant 0 : index
    %c0_51 = arith.constant 0 : index
    %57 = vector.load %arg4[%c0_49, %c0_50, %c0_51] : memref<1x2x128xf32, #tpu.memory_space<vmem>>, vector<1x2x128xf32>
    %58 = vector.shape_cast %57 : vector<1x2x128xf32> to vector<2x128xf32>
    %59 = arith.addf %58, %56 : vector<2x128xf32>
    %c0_52 = arith.constant 0 : index
    %c0_53 = arith.constant 0 : index
    %c0_54 = arith.constant 0 : index
    %60 = vector.load %arg4[%c0_52, %c0_53, %c0_54] : memref<1x2x128xf32, #tpu.memory_space<vmem>>, vector<1x2x128xf32>
    %61 = vector.shape_cast %60 : vector<1x2x128xf32> to vector<2x128xf32>
    %62 = vector.shape_cast %59 : vector<2x128xf32> to vector<1x2x128xf32>
    tpu.vector_store %arg4[%c0_52, %c0_53, %c0_54], %62 {strides = array<i32>} : memref<1x2x128xf32, #tpu.memory_space<vmem>>, vector<1x2x128xf32>,
    %c0_55 = arith.constant 0 : index
    %c768 = arith.constant 768 : index
    %63 = vector.load %arg2[%c0_55, %c768] : memref<2x1024xf32, #tpu.memory_space<vmem>>, vector<2x128xf32>
    %c0_56 = arith.constant 0 : index
    %c768_57 = arith.constant 768 : index
    %64 = vector.load %arg3[%c0_56, %c768_57] : memref<2x1024xf32, #tpu.memory_space<vmem>>, vector<2x128xf32>
    %65 = arith.subf %63, %64 : vector<2x128xf32>
    %66 = arith.mulf %65, %65 : vector<2x128xf32>
    %c0_58 = arith.constant 0 : index
    %c0_59 = arith.constant 0 : index
    %c0_60 = arith.constant 0 : index
    %67 = vector.load %arg4[%c0_58, %c0_59, %c0_60] : memref<1x2x128xf32, #tpu.memory_space<vmem>>, vector<1x2x128xf32>
    %68 = vector.shape_cast %67 : vector<1x2x128xf32> to vector<2x128xf32>
    %69 = arith.addf %68, %66 : vector<2x128xf32>
    %c0_61 = arith.constant 0 : index
    %c0_62 = arith.constant 0 : index
    %c0_63 = arith.constant 0 : index
    %70 = vector.load %arg4[%c0_61, %c0_62, %c0_63] : memref<1x2x128xf32, #tpu.memory_space<vmem>>, vector<1x2x128xf32>
    %71 = vector.shape_cast %70 : vector<1x2x128xf32> to vector<2x128xf32>
    %72 = vector.shape_cast %69 : vector<2x128xf32> to vector<1x2x128xf32>
    tpu.vector_store %arg4[%c0_61, %c0_62, %c0_63], %72 {strides = array<i32>} : memref<1x2x128xf32, #tpu.memory_space<vmem>>, vector<1x2x128xf32>,
    %c0_64 = arith.constant 0 : index
    %c896 = arith.constant 896 : index
    %73 = vector.load %arg2[%c0_64, %c896] : memref<2x1024xf32, #tpu.memory_space<vmem>>, vector<2x128xf32>
    %c0_65 = arith.constant 0 : index
    %c896_66 = arith.constant 896 : index
    %74 = vector.load %arg3[%c0_65, %c896_66] : memref<2x1024xf32, #tpu.memory_space<vmem>>, vector<2x128xf32>
    %75 = arith.subf %73, %74 : vector<2x128xf32>
    %76 = arith.mulf %75, %75 : vector<2x128xf32>
    %c0_67 = arith.constant 0 : index
    %c0_68 = arith.constant 0 : index
    %c0_69 = arith.constant 0 : index
    %77 = vector.load %arg4[%c0_67, %c0_68, %c0_69] : memref<1x2x128xf32, #tpu.memory_space<vmem>>, vector<1x2x128xf32>
    %78 = vector.shape_cast %77 : vector<1x2x128xf32> to vector<2x128xf32>
    %79 = arith.addf %78, %76 : vector<2x128xf32>
    %c0_70 = arith.constant 0 : index
    %c0_71 = arith.constant 0 : index
    %c0_72 = arith.constant 0 : index
    %80 = vector.load %arg4[%c0_70, %c0_71, %c0_72] : memref<1x2x128xf32, #tpu.memory_space<vmem>>, vector<1x2x128xf32>
    %81 = vector.shape_cast %80 : vector<1x2x128xf32> to vector<2x128xf32>
    %82 = vector.shape_cast %79 : vector<2x128xf32> to vector<1x2x128xf32>
    tpu.vector_store %arg4[%c0_70, %c0_71, %c0_72], %82 {strides = array<i32>} : memref<1x2x128xf32, #tpu.memory_space<vmem>>, vector<1x2x128xf32>,
    return
  }
  func.func @transform_0(%arg0: i32, %arg1: i32) -> (i32, i32) {
    %c0_i32 = arith.constant 0 : i32
    return %arg0, %arg1 : i32, i32
  }
  func.func @transform_1(%arg0: i32, %arg1: i32) -> (i32, i32) {
    %c0_i32 = arith.constant 0 : i32
    return %arg0, %arg1 : i32, i32
  }
  func.func @transform_2(%arg0: i32, %arg1: i32) -> (i32, i32, i32) {
    %c0_i32 = arith.constant 0 : i32
    %c0_i32_0 = arith.constant 0 : i32
    %c0_i32_1 = arith.constant 0 : i32
    return %arg0, %c0_i32, %c0_i32_0 : i32, i32, i32
  }
}

</mosaic_0001>

<llo_original>
// kernel: kl_loss.1
$region0: #{kl_loss.1}
  #allocation0 [shape = 'u32[]', space=smem, size = 0x4, offset = 0x4, fixed_abs, tag = 'smem constant byte address 0x4 - core index']
  #allocation1 [shape = 'u32[72,128]{1,0:T(1,128)}', space=vmem, size = 0x9000, scoped, tag = 'internal scratch']
  %s0 = inlined_call_operand.vmem [shape: f32[2,1024], index: 0, kind: input, shape index: {}]
  %s1 = inlined_call_operand.vmem [shape: f32[2,1024], index: 1, kind: input, shape index: {}]
  %s2 = inlined_call_operand.vmem [shape: f32[1,2,128], index: 2, kind: output, shape index: {}]
  %s3 = sld [smem:[#allocation0]]
  $region22: #{kl_loss.1} parent=0
    _
  %s5 = ssub.s32 1, %s3
  %s6 = scalar_select 0, %s5, %s3
  // Predicated region
  $region2: #{kl_loss.1} parent=0 // pred_check
    _
  $region3: #{kl_loss.1} parent=0 // pred_check_branch
    %8 = sbr.rel (0) target = $region5
  $region4: #{kl_loss.1} parent=0 // pred_region
    _
  $region5: #{kl_loss.1} parent=0 // pred_fallthru
    _
  // Predicated region
  $region6: #{kl_loss.1} parent=0 // pred_check
    _
  $region7: #{kl_loss.1} parent=0 // pred_check_branch
    %10 = sbr.rel (0) target = $region9
  $region8: #{kl_loss.1} parent=0 // pred_region
    _
  $region9: #{kl_loss.1} parent=0 // pred_fallthru
    _
  %p11 = scmp.eq.s32.totalorder 0, 0
  // Predicated region
  $region10: #{kl_loss.1} parent=0 // pred_check
    %p12 = pneg %p11
  $region11: #{kl_loss.1} parent=0 // pred_check_branch
    %14 = sbr.rel (%p12) target = $region13
  $region12: #{kl_loss.1} parent=0 // pred_region
    %15 = vst [vmem:[%s2] sm:$0x3] 0.0
  $region13: #{kl_loss.1} parent=0 // pred_fallthru
    _
  %v16 = vld [vmem:[%s0] sm:$0x3]
  %v17 = vld [vmem:[%s1] sm:$0x3]
  %v18 = vsub.f32 %v16, %v17
  %v19 = vmul.f32 %v18, %v18
  %v20 = vld [vmem:[%s2] sm:$0x3]
  %v21 = vadd.f32 %v20, %v19
  %22 = vst [vmem:[%s2] sm:$0x3] %v21
  %v23 = vld [vmem:[%s0 + $0x2] sm:$0x3]
  %v24 = vld [vmem:[%s1 + $0x2] sm:$0x3]
  %v25 = vsub.f32 %v23, %v24
  %v26 = vmul.f32 %v25, %v25
  %v27 = vld [vmem:[%s2] sm:$0x3]
  %v28 = vadd.f32 %v27, %v26
  %29 = vst [vmem:[%s2] sm:$0x3] %v28
  %v30 = vld [vmem:[%s0 + $0x4] sm:$0x3]
  %v31 = vld [vmem:[%s1 + $0x4] sm:$0x3]
  %v32 = vsub.f32 %v30, %v31
  %v33 = vmul.f32 %v32, %v32
  %v34 = vld [vmem:[%s2] sm:$0x3]
  %v35 = vadd.f32 %v34, %v33
  %36 = vst [vmem:[%s2] sm:$0x3] %v35
  %v37 = vld [vmem:[%s0 + $0x6] sm:$0x3]
  %v38 = vld [vmem:[%s1 + $0x6] sm:$0x3]
  %v39 = vsub.f32 %v37, %v38
  %v40 = vmul.f32 %v39, %v39
  %v41 = vld [vmem:[%s2] sm:$0x3]
  %v42 = vadd.f32 %v41, %v40
  %43 = vst [vmem:[%s2] sm:$0x3] %v42
  %v44 = vld [vmem:[%s0 + $0x8] sm:$0x3]
  %v45 = vld [vmem:[%s1 + $0x8] sm:$0x3]
  %v46 = vsub.f32 %v44, %v45
  %v47 = vmul.f32 %v46, %v46
  %v48 = vld [vmem:[%s2] sm:$0x3]
  %v49 = vadd.f32 %v48, %v47
  %50 = vst [vmem:[%s2] sm:$0x3] %v49
  %v51 = vld [vmem:[%s0 + $0xa] sm:$0x3]
  %v52 = vld [vmem:[%s1 + $0xa] sm:$0x3]
  %v53 = vsub.f32 %v51, %v52
  %v54 = vmul.f32 %v53, %v53
  %v55 = vld [vmem:[%s2] sm:$0x3]
  %v56 = vadd.f32 %v55, %v54
  %57 = vst [vmem:[%s2] sm:$0x3] %v56
  %v58 = vld [vmem:[%s0 + $0xc] sm:$0x3]
  %v59 = vld [vmem:[%s1 + $0xc] sm:$0x3]
  %v60 = vsub.f32 %v58, %v59
  %v61 = vmul.f32 %v60, %v60
  %v62 = vld [vmem:[%s2] sm:$0x3]
  %v63 = vadd.f32 %v62, %v61
  %64 = vst [vmem:[%s2] sm:$0x3] %v63
  %v65 = vld [vmem:[%s0 + $0xe] sm:$0x3]
  %v66 = vld [vmem:[%s1 + $0xe] sm:$0x3]
  %v67 = vsub.f32 %v65, %v66
  %v68 = vmul.f32 %v67, %v67
  %v69 = vld [vmem:[%s2] sm:$0x3]
  %v70 = vadd.f32 %v69, %v68
  %71 = vst [vmem:[%s2] sm:$0x3] %v70
  // Predicated region
  $region14: #{kl_loss.1} parent=0 // pred_check
    _
  $region15: #{kl_loss.1} parent=0 // pred_check_branch
    %73 = sbr.rel (0) target = $region17
  $region16: #{kl_loss.1} parent=0 // pred_region
    _
  $region17: #{kl_loss.1} parent=0 // pred_fallthru
    _
  // Predicated region
  $region18: #{kl_loss.1} parent=0 // pred_check
    _
  $region19: #{kl_loss.1} parent=0 // pred_check_branch
    %75 = sbr.rel (0) target = $region21
  $region20: #{kl_loss.1} parent=0 // pred_region
    _
  $region21: #{kl_loss.1} parent=0 // pred_fallthru
    _

</llo_original>
